<compile_context>
chip_gen: v6e
topology: v6e:2x2x1
jax: 0.10.0
libtpu: 0.0.40
codegen_flags: <defaults>
</compile_context>

<pallas_src>
import functools

import jax
import jax.numpy as jnp
from jax.experimental import pallas as pl
from jax.experimental.pallas import tpu as pltpu


LANE = 128
SUBLANE = 8
TARGET_BLOCK_BYTES = 1 << 20  # ~1 MiB per x tile; 2x-buffered in/out/bits stays < 8 MiB


def build_pos_encoding(seq_len: int, d_model: int) -> jnp.ndarray:
    """Deterministic sinusoidal table, same math as the PyTorch __init__."""
    pos = jnp.arange(seq_len, dtype=jnp.float32)[:, None]                  # (S, 1)
    div_term = jnp.power(
        10000.0, jnp.arange(0, d_model, 2, dtype=jnp.float32) / d_model   # (D/2,)
    )
    angles = pos / div_term                                                # (S, D/2)
    pe = jnp.zeros((seq_len, d_model), dtype=jnp.float32)
    pe = pe.at[:, 0::2].set(jnp.sin(angles))
    pe = pe.at[:, 1::2].set(jnp.cos(angles))
    return pe


def _largest_divisor(total: int, unit: int, cap: int):
    """Largest d <= cap with d % unit == 0 and total % d == 0, else None."""
    d = (min(cap, total) // unit) * unit
    while d >= unit:
        if total % d == 0:
            return d
        d -= unit
    return None


# ---------------------------------------------------------------------------
# Kernels (operate on 2D lane-dense tiles)
# ---------------------------------------------------------------------------
def _add_pe_kernel(x_ref, pe_ref, o_ref):
    # x_ref: (rows, cols); pe_ref: (1, cols) -> sublane broadcast over rows.
    o_ref[...] = x_ref[...] + pe_ref[...]


def _add_pe_dropout_kernel(x_ref, pe_ref, bits_ref, o_ref, *, threshold: int,
                           inv_keep: float):
    # bits_ref holds uniform int32 bits (bitcast of uniform uint32). Keeping an
    # element iff bits < threshold (signed compare) keeps with prob keep_prob.
    y = x_ref[...] + pe_ref[...]
    keep = bits_ref[...] < jnp.int32(threshold)
    scaled = y * jnp.asarray(inv_keep, y.dtype)
    o_ref[...] = jnp.where(keep, scaled, jnp.zeros_like(y))


# ---------------------------------------------------------------------------
# Wrapper
# ---------------------------------------------------------------------------
def sinusoidal_pos_encoding_forward(
    x: jnp.ndarray,
    pos_encoding: jnp.ndarray,
    dropout: float = 0.0,
    training: bool = False,
    rng_key=None,
) -> jnp.ndarray:
    """x: (B, S, D).  pos_encoding: (S_max, D).  Returns (B, S, D)."""
    B, S, D = x.shape
    pe = pos_encoding[:S, :].astype(x.dtype)        # crop, same as pe[:x.size(1), :]

    flat = S * D
    x2 = x.reshape(B, flat)                          # contiguous reshape (free)
    pe2 = pe.reshape(1, flat)

    # Column tile: multiple of 128 (lane-dense stores) that divides S*D, else full.
    col = _largest_divisor(flat, LANE, 16384) or flat
    # Row tile: multiple of 8 dividing B, sized so the x tile is ~TARGET_BLOCK_BYTES.
    itemsize = jnp.dtype(x.dtype).itemsize
    target_rows = max(1, (TARGET_BLOCK_BYTES // itemsize) // col)
    row = _largest_divisor(B, SUBLANE, target_rows) or B

    grid = (B // row, flat // col)
    x_spec = pl.BlockSpec((row, col), lambda i, j: (i, j))
    pe_spec = pl.BlockSpec((1, col), lambda i, j: (0, j))   # only current PE tile in VMEM
    bits_spec = pl.BlockSpec((row, col), lambda i, j: (i, j))
    out_spec = pl.BlockSpec((row, col), lambda i, j: (i, j))
    out_shape = jax.ShapeDtypeStruct((B, flat), x.dtype)
    cparams = pltpu.CompilerParams(
        dimension_semantics=("parallel", "parallel"))       # independent tiles

    if (not training) or dropout == 0.0:
        out2 = pl.pallas_call(
            _add_pe_kernel,
            out_shape=out_shape,
            grid_spec=pltpu.PrefetchScalarGridSpec(
                num_scalar_prefetch=0,
                grid=grid,
                in_specs=[x_spec, pe_spec],
                out_specs=out_spec,
            ),
            compiler_params=cparams,
        )(x2, pe2)
        return out2.reshape(B, S, D)

    # Training path: inverted dropout with an integer-threshold mask.
    keep_prob = 1.0 - float(dropout)
    thr_unsigned = min(int(round(keep_prob * 4294967296.0)), 4294967295)
    thr_signed = thr_unsigned - (1 << 31)                    # signed-compare threshold
    if rng_key is None:
        rng_key = jax.random.PRNGKey(0)
    bits_u32 = jax.random.bits(rng_key, (B, flat), dtype=jnp.uint32)
    bits_i32 = jax.lax.bitcast_convert_type(bits_u32, jnp.int32)

    kernel = functools.partial(
        _add_pe_dropout_kernel, threshold=thr_signed, inv_keep=1.0 / keep_prob)
    out2 = pl.pallas_call(
        kernel,
        out_shape=out_shape,
        grid_spec=pltpu.PrefetchScalarGridSpec(
            num_scalar_prefetch=0,
            grid=grid,
            in_specs=[x_spec, pe_spec, bits_spec],
            out_specs=out_spec,
        ),
        compiler_params=cparams,
    )(x2, pe2, bits_i32)
    return out2.reshape(B, S, D)


# ---------------------------------------------------------------------------
# Main
# ---------------------------------------------------------------------------
if __name__ == "__main__":
    # Module hyperparameters (deterministic, in-script).
    d_model = 32
    seq_len_max = 16   # table length (seq_len in __init__)
    dropout_p = 0.1

    # Input: batch=2, seq=8 (<= seq_len_max to exercise the crop), hidden=32.
    batch, seq = 2, 8
    key = jax.random.PRNGKey(0)
    x = jax.random.normal(key, (batch, seq, d_model), dtype=jnp.float32)

    pe_table = build_pos_encoding(seq_len_max, d_model)
    ref = x + pe_table[:seq, :][None, :, :]

    # Eval-mode forward (dropout is identity) -> check against pure-JAX reference.
    out = sinusoidal_pos_encoding_forward(
        x, pe_table, dropout=dropout_p, training=False)
    out = jax.block_until_ready(out)
    assert out.shape == (batch, seq, d_model)
    assert jnp.allclose(out, ref, atol=1e-6, rtol=1e-6)

    # Training-mode forward with dropout. Every output element must be either 0
    # (dropped) or (x + pe) / keep_prob (kept).
    drop_key = jax.random.PRNGKey(123)
    out_train = sinusoidal_pos_encoding_forward(
        x, pe_table, dropout=dropout_p, training=True, rng_key=drop_key)
    out_train = jax.block_until_ready(out_train)
    assert out_train.shape == (batch, seq, d_model)
    keep_prob = 1.0 - dropout_p
    ref_scaled = ref / keep_prob
    ok = jnp.isclose(out_train, 0.0, atol=1e-6) | jnp.isclose(
        out_train, ref_scaled, atol=1e-5, rtol=1e-5)
    assert bool(jnp.all(ok))

    print("KERNEL_OK")
</pallas_src>

<mosaic_0001>
module attributes {stable_mosaic.version = 11 : i64} {
  func.func @_add_pe_kernel(%arg0: i32, %arg1: i32, %arg2: memref<2x256xf32, #tpu.memory_space<vmem>>, %arg3: memref<1x256xf32, #tpu.memory_space<vmem>>, %arg4: memref<2x256xf32, #tpu.memory_space<vmem>>) attributes {dimension_semantics = [#tpu.dimension_semantics<parallel>, #tpu.dimension_semantics<parallel>], iteration_bounds = array<i64: 1, 1>, scalar_prefetch = 0 : i64, scratch_operands = 0 : i64, tpu.core_type = #tpu.core_type<tc>, window_params = [{transform_indices = @transform_0, window_bounds = array<i64: 2, 256>}, {transform_indices = @transform_1, window_bounds = array<i64: 1, 256>}, {transform_indices = @transform_2, window_bounds = array<i64: 2, 256>}]} {
    %c0 = arith.constant 0 : index
    %c0_0 = arith.constant 0 : index
    %0 = vector.load %arg2[%c0, %c0_0] : memref<2x256xf32, #tpu.memory_space<vmem>>, vector<2x256xf32>
    %c0_1 = arith.constant 0 : index
    %c0_2 = arith.constant 0 : index
    %1 = vector.load %arg3[%c0_1, %c0_2] : memref<1x256xf32, #tpu.memory_space<vmem>>, vector<1x256xf32>
    %2 = vector.broadcast %1 : vector<1x256xf32> to vector<2x256xf32>
    %3 = arith.addf %0, %2 : vector<2x256xf32>
    %c0_3 = arith.constant 0 : index
    %c0_4 = arith.constant 0 : index
    %4 = vector.load %arg4[%c0_3, %c0_4] : memref<2x256xf32, #tpu.memory_space<vmem>>, vector<2x256xf32>
    tpu.vector_store %arg4[%c0_3, %c0_4], %3 {strides = array<i32>} : memref<2x256xf32, #tpu.memory_space<vmem>>, vector<2x256xf32>,
    return
  }
  func.func @transform_0(%arg0: i32, %arg1: i32) -> (i32, i32) {
    %c0_i32 = arith.constant 0 : i32
    return %arg0, %arg1 : i32, i32
  }
  func.func @transform_1(%arg0: i32, %arg1: i32) -> (i32, i32) {
    %c0_i32 = arith.constant 0 : i32
    %c0_i32_0 = arith.constant 0 : i32
    return %c0_i32, %arg1 : i32, i32
  }
  func.func @transform_2(%arg0: i32, %arg1: i32) -> (i32, i32) {
    %c0_i32 = arith.constant 0 : i32
    return %arg0, %arg1 : i32, i32
  }
}

</mosaic_0001>

<llo_original>
// kernel: tpu_custom_call.1
$region0: #{tpu_custom_call.1}
  #allocation0 [shape = 'u32[]', space=smem, size = 0x4, offset = 0x4, fixed_abs, tag = 'smem constant byte address 0x4 - core index']
  #allocation1 [shape = 'u32[144,128]{1,0:T(1,128)}', space=vmem, size = 0x12000, scoped, tag = 'internal scratch']
  %s0 = inlined_call_operand.hbm [shape: f32[2,256], index: 0, kind: input, shape index: {}]
  %s1 = inlined_call_operand.hbm [shape: f32[1,256], index: 1, kind: input, shape index: {}]
  %s2 = inlined_call_operand.hbm [shape: f32[2,256], index: 2, kind: output, shape index: {}]
  %s3 = sld [smem:[#allocation0]]
  $region26: #{tpu_custom_call.1} parent=0
    _
  %s5 = ssub.s32 1, %s3
  %s6 = scalar_select 0, %s5, %s3
  $region1: #{tpu_custom_call.1} parent=0
    #allocation2 [shape = 'u8[2048]{0}', space=vmem, size = 0x800, scoped, tag = 'input window, operand 0, single buffered']
    #allocation3 [shape = 's32[1]{0}', space=sflag, size = 0x4, scoped, tag = 'scoped memory for tpu_custom_call.1']
    #allocation4 [shape = 's32[1]{0}', space=sflag, size = 0x4, scoped, tag = 'scoped memory for tpu_custom_call.1']
    #allocation5 [shape = 'u8[1024]{0}', space=vmem, size = 0x400, scoped, tag = 'input window, operand 1, single buffered']
    #allocation6 [shape = 's32[1]{0}', space=sflag, size = 0x4, scoped, tag = 'scoped memory for tpu_custom_call.1']
    #allocation7 [shape = 'u8[2048]{0}', space=vmem, size = 0x800, scoped, tag = 'output window, operand 0, single buffered']
    %7 = vsyncpa [#allocation3], 0
    %8 = vsyncpa [#allocation6], 0
    %9 = vsyncpa [#allocation4], 0
    // Predicated region
    $region2: #{tpu_custom_call.1} parent=1 // pred_check
      _
    $region3: #{tpu_custom_call.1} parent=1 // pred_check_branch
      %11 = sbr.rel (0) target = $region5
    $region4: #{tpu_custom_call.1} parent=1 // pred_region
      %s13 = ssub.s32 64, 64
      %14 = vsyncadd [#allocation3], %s13
      %s16 = sshll.u32 [#allocation2], 4
      %s17 = int_to_ptr.vmem [resolvable:$true] %s16
      %19 = dma.hbm_to_vmem [thread:$0]  %s0, 64, %s17, [#allocation3]
    $region5: #{tpu_custom_call.1} parent=1 // pred_fallthru
      _
    // Predicated region
    $region6: #{tpu_custom_call.1} parent=1 // pred_check
      _
    $region7: #{tpu_custom_call.1} parent=1 // pred_check_branch
      %21 = sbr.rel (0) target = $region9
    $region8: #{tpu_custom_call.1} parent=1 // pred_region
      %s23 = ssub.s32 32, 32
      %24 = vsyncadd [#allocation6], %s23
      %s26 = sshll.u32 [#allocation5], 4
      %s27 = int_to_ptr.vmem [resolvable:$true] %s26
      %29 = dma.hbm_to_vmem [thread:$0]  %s1, 32, %s27, [#allocation6]
    $region9: #{tpu_custom_call.1} parent=1 // pred_fallthru
      _
    // Predicated region
    $region10: #{tpu_custom_call.1} parent=1 // pred_check
      _
    $region11: #{tpu_custom_call.1} parent=1 // pred_check_branch
      %31 = sbr.rel (0) target = $region13
    $region12: #{tpu_custom_call.1} parent=1 // pred_region
      %32 = dma.done [#allocation3], 64
    $region13: #{tpu_custom_call.1} parent=1 // pred_fallthru
      _
    // Predicated region
    $region14: #{tpu_custom_call.1} parent=1 // pred_check
      _
    $region15: #{tpu_custom_call.1} parent=1 // pred_check_branch
      %34 = sbr.rel (0) target = $region17
    $region16: #{tpu_custom_call.1} parent=1 // pred_region
      %35 = dma.done [#allocation6], 32
    $region17: #{tpu_custom_call.1} parent=1 // pred_fallthru
      _
    %v36 = vld [vmem:[#allocation2] sm:$0xf]
    %v37 = vld [vmem:[#allocation5] sm:$0x3]
    %v39 = vlaneseq
    %v40 = vshrl.u32 %v39, 7
    %v41 = vsub.s32 0, %v40
    %v42 = vrot.slane %v37, %v41
    %v43 = vlaneseq
    %v44 = vshrl.u32 %v43, 7
    %v45 = vsub.s32 1, %v44
    %v46 = vrot.slane %v37, %v45
    %v47 = vcombine.low %v42, %v46
    %v49 = vunpack.c.l.s4 1983009808
    %v50 = vunpack.c.0.s8 %v49
    %v51 = vlaneseq
    %v52 = vshrl.u32 %v51, 7
    %v53 = vsub.s32 %v50, %v52
    %v54 = vrot.slane %v47, %v53
    %v56 = vadd.f32 %v36, %v54
    %57 = vst [vmem:[#allocation7] sm:$0xf] %v56
    // Predicated region
    $region18: #{tpu_custom_call.1} parent=1 // pred_check
      _
    $region19: #{tpu_custom_call.1} parent=1 // pred_check_branch
      %59 = sbr.rel (0) target = $region21
    $region20: #{tpu_custom_call.1} parent=1 // pred_region
      %s61 = ssub.s32 64, 64
      %62 = vsyncadd [#allocation4], %s61
      %s64 = sshll.u32 [#allocation7], 4
      %s65 = int_to_ptr.vmem [resolvable:$true] %s64
      %67 = dma.vmem_to_hbm [thread:$0]  %s65, 64, %s2, [#allocation4]
    $region21: #{tpu_custom_call.1} parent=1 // pred_fallthru
      _
    // Predicated region
    $region22: #{tpu_custom_call.1} parent=1 // pred_check
      _
    $region23: #{tpu_custom_call.1} parent=1 // pred_check_branch
      %69 = sbr.rel (0) target = $region25
    $region24: #{tpu_custom_call.1} parent=1 // pred_region
      %70 = dma.done [#allocation4], 64
    $region25: #{tpu_custom_call.1} parent=1 // pred_fallthru
      _
    %71 = vsyncpa [#allocation3], 1
    %72 = vsyncpa [#allocation6], 1
    %73 = vsyncpa [#allocation4], 1

</llo_original>
